<compile_context>
chip_gen: v6e
topology: v6e:2x2x1
jax: 0.10.0
libtpu: 0.0.40
codegen_flags: <defaults>
</compile_context>

<pallas_src>
import jax
import jax.numpy as jnp
from jax.experimental import pallas as pl
from jax.experimental.pallas import tpu as pltpu


def _auto_lora_scale_kernel(gate_ref, mu_ref, sigma_ref, vmu_ref, vsigma_ref):
    # gate_ref:             (RP, 1)  f32 softmax(theta), sublane-repeated
    # mu_ref / sigma_ref:   (RP, TN) packed column tile of alpha_mu / alpha_sigma
    # vmu_ref / vsigma_ref: (RP, TN) packed column tiles of the outputs
    g = gate_ref[...]  # (RP, 1) broadcasts over lanes
    vmu_ref[...] = (g * mu_ref[...].astype(jnp.float32)).astype(vmu_ref.dtype)
    vsigma_ref[...] = (g * sigma_ref[...].astype(jnp.float32)).astype(vsigma_ref.dtype)


def _choose_col_tile(ncols, cap=16384):
    """Column (lane) tile for the packed (RP, ncols) arrays.

    Multiple of 128 (lane-dense unmasked vst), capped so 4 streams x 2 pipeline
    buffers fit comfortably in every generation's scoped-VMEM default, and split
    into >= 2 grid steps when possible so v7x megacore actually shards the work.
    """
    if ncols <= 256:
        return ncols  # full-extent block is legal; too small to split usefully
    tn = min(cap, ncols)
    if pl.cdiv(ncols, tn) < 2:
        # whole array would be one block -> split into two lane-dense halves
        tn = (((ncols + 1) // 2) + 127) // 128 * 128
    return max(128, (tn // 128) * 128)


def auto_lora_quantizer_forward(theta, alpha_mu, alpha_sigma):
    """theta: (4,) gate logits; alpha_mu, alpha_sigma: (4, N).
    Returns (diag(softmax(theta)) @ alpha_mu, diag(softmax(theta)) @ alpha_sigma)."""
    R, N = alpha_mu.shape
    assert theta.shape == (R,), theta.shape
    assert alpha_sigma.shape == (R, N), alpha_sigma.shape
    dtype = alpha_mu.dtype

    # Softmax hoisted out of the kernel (4 elements, O(1) wrapper cost).
    gate = jax.nn.softmax(theta.astype(jnp.float32))  # (R,)

    # Sublane packing factor: fill all 8 f32 (16 bf16) sublanes of each vreg.
    sublanes = max(8, 32 // jnp.dtype(dtype).itemsize)
    pack = max(1, sublanes // R)

    # Pad N only for `pack` divisibility (<= pack-1 columns); ragged lane extents
    # are handled by the cdiv grid + masked partial last block, not a huge block.
    if N % pack != 0:
        pad_cols = pack - (N % pack)
        alpha_mu = jnp.pad(alpha_mu, ((0, 0), (0, pad_cols)))
        alpha_sigma = jnp.pad(alpha_sigma, ((0, 0), (0, pad_cols)))
        Np = N + pad_cols
    else:
        Np = N

    RP = R * pack
    ncols = Np // pack
    mu_packed = alpha_mu.reshape(RP, ncols)        # row-major reshape: free (bitcast)
    sigma_packed = alpha_sigma.reshape(RP, ncols)
    gate_col = jnp.repeat(gate, pack).reshape(RP, 1).astype(jnp.float32)

    tn = _choose_col_tile(ncols)
    grid = (pl.cdiv(ncols, tn),)

    out_shape = (
        jax.ShapeDtypeStruct((RP, ncols), dtype),
        jax.ShapeDtypeStruct((RP, ncols), dtype),
    )
    grid_spec = pltpu.PrefetchScalarGridSpec(
        num_scalar_prefetch=0,
        grid=grid,
        in_specs=[
            pl.BlockSpec((RP, 1), lambda j: (0, 0)),   # gate: tiny, resident
            pl.BlockSpec((RP, tn), lambda j: (0, j)),  # alpha_mu column tile
            pl.BlockSpec((RP, tn), lambda j: (0, j)),  # alpha_sigma column tile
        ],
        out_specs=(
            pl.BlockSpec((RP, tn), lambda j: (0, j)),
            pl.BlockSpec((RP, tn), lambda j: (0, j)),
        ),
    )

    vmu_packed, vsigma_packed = pl.pallas_call(
        _auto_lora_scale_kernel,
        out_shape=out_shape,
        grid_spec=grid_spec,
        compiler_params=pltpu.CompilerParams(
            dimension_semantics=("parallel",)),
    )(gate_col, mu_packed, sigma_packed)

    v_alpha_mu = vmu_packed.reshape(R, Np)[:, :N]
    v_alpha_sigma = vsigma_packed.reshape(R, Np)[:, :N]
    return v_alpha_mu, v_alpha_sigma


if __name__ == "__main__":
    # Module-consistent small shapes: theta has exactly 4 gate logits; the gated
    # matrices are (4, N).  N=1024 exercises the packed multi-step grid path;
    # N=1000 exercises the ragged (masked partial last block) path.
    R = 4
    p_init = 1.0

    root = jax.random.PRNGKey(0)
    k_theta = jax.random.fold_in(root, 1)

    # __init__ sets theta = p_init * ones(4); perturb it (it is a trainable
    # Parameter) so the softmax gate is non-uniform and the check is non-trivial.
    theta = p_init + 0.5 * jax.random.normal(k_theta, (R,), dtype=jnp.float32)

    def reference(theta, mu, sigma):
        gate_matrix = jnp.diag(jax.nn.softmax(theta))
        return (jnp.matmul(gate_matrix, mu, precision=jax.lax.Precision.HIGHEST),
                jnp.matmul(gate_matrix, sigma, precision=jax.lax.Precision.HIGHEST))

    for N in (1024, 1000):
        k_mu, k_sigma = jax.random.split(jax.random.fold_in(root, N))
        alpha_mu = jax.random.normal(k_mu, (R, N), dtype=jnp.float32)
        alpha_sigma = jax.nn.softplus(
            jax.random.normal(k_sigma, (R, N), dtype=jnp.float32))

        v_mu, v_sigma = jax.block_until_ready(
            auto_lora_quantizer_forward(theta, alpha_mu, alpha_sigma))
        ref_mu, ref_sigma = reference(theta, alpha_mu, alpha_sigma)

        assert v_mu.shape == (R, N) and v_sigma.shape == (R, N), \
            (v_mu.shape, v_sigma.shape)
        assert jnp.allclose(v_mu, ref_mu, atol=1e-5, rtol=1e-5), \
            float(jnp.max(jnp.abs(v_mu - ref_mu)))
        assert jnp.allclose(v_sigma, ref_sigma, atol=1e-5, rtol=1e-5), \
            float(jnp.max(jnp.abs(v_sigma - ref_sigma)))

    print("KERNEL_OK")
</pallas_src>

<mosaic_0001>
module attributes {stable_mosaic.version = 11 : i64} {
  func.func @_auto_lora_scale_kernel(%arg0: i32, %arg1: memref<8x1xf32, #tpu.memory_space<vmem>>, %arg2: memref<8x256xf32, #tpu.memory_space<vmem>>, %arg3: memref<8x256xf32, #tpu.memory_space<vmem>>, %arg4: memref<8x256xf32, #tpu.memory_space<vmem>>, %arg5: memref<8x256xf32, #tpu.memory_space<vmem>>) attributes {dimension_semantics = [#tpu.dimension_semantics<parallel>], iteration_bounds = array<i64: 2>, scalar_prefetch = 0 : i64, scratch_operands = 0 : i64, tpu.core_type = #tpu.core_type<tc>, window_params = [{pipeline_mode = #tpu.pipeline_mode<synchronous>, transform_indices = @transform_0, window_bounds = array<i64: 8, 1>}, {transform_indices = @transform_1, window_bounds = array<i64: 8, 256>}, {transform_indices = @transform_2, window_bounds = array<i64: 8, 256>}, {transform_indices = @transform_3, window_bounds = array<i64: 8, 256>}, {transform_indices = @transform_4, window_bounds = array<i64: 8, 256>}]} {
    %c0 = arith.constant 0 : index
    %c0_0 = arith.constant 0 : index
    %0 = vector.load %arg1[%c0, %c0_0] : memref<8x1xf32, #tpu.memory_space<vmem>>, vector<8x1xf32>
    %c0_1 = arith.constant 0 : index
    %c0_2 = arith.constant 0 : index
    %1 = vector.load %arg2[%c0_1, %c0_2] : memref<8x256xf32, #tpu.memory_space<vmem>>, vector<8x256xf32>
    %2 = vector.broadcast %0 : vector<8x1xf32> to vector<8x256xf32>
    %3 = arith.mulf %2, %1 : vector<8x256xf32>
    %c0_3 = arith.constant 0 : index
    %c0_4 = arith.constant 0 : index
    %4 = vector.load %arg4[%c0_3, %c0_4] : memref<8x256xf32, #tpu.memory_space<vmem>>, vector<8x256xf32>
    tpu.vector_store %arg4[%c0_3, %c0_4], %3 {strides = array<i32>} : memref<8x256xf32, #tpu.memory_space<vmem>>, vector<8x256xf32>,
    %c0_5 = arith.constant 0 : index
    %c0_6 = arith.constant 0 : index
    %5 = vector.load %arg3[%c0_5, %c0_6] : memref<8x256xf32, #tpu.memory_space<vmem>>, vector<8x256xf32>
    %6 = vector.broadcast %0 : vector<8x1xf32> to vector<8x256xf32>
    %7 = arith.mulf %6, %5 : vector<8x256xf32>
    %c0_7 = arith.constant 0 : index
    %c0_8 = arith.constant 0 : index
    %8 = vector.load %arg5[%c0_7, %c0_8] : memref<8x256xf32, #tpu.memory_space<vmem>>, vector<8x256xf32>
    tpu.vector_store %arg5[%c0_7, %c0_8], %7 {strides = array<i32>} : memref<8x256xf32, #tpu.memory_space<vmem>>, vector<8x256xf32>,
    return
  }
  func.func @transform_0(%arg0: i32) -> (i32, i32) {
    %c0_i32 = arith.constant 0 : i32
    %c0_i32_0 = arith.constant 0 : i32
    %c0_i32_1 = arith.constant 0 : i32
    return %c0_i32, %c0_i32_0 : i32, i32
  }
  func.func @transform_1(%arg0: i32) -> (i32, i32) {
    %c0_i32 = arith.constant 0 : i32
    %c0_i32_0 = arith.constant 0 : i32
    return %c0_i32, %arg0 : i32, i32
  }
  func.func @transform_2(%arg0: i32) -> (i32, i32) {
    %c0_i32 = arith.constant 0 : i32
    %c0_i32_0 = arith.constant 0 : i32
    return %c0_i32, %arg0 : i32, i32
  }
  func.func @transform_3(%arg0: i32) -> (i32, i32) {
    %c0_i32 = arith.constant 0 : i32
    %c0_i32_0 = arith.constant 0 : i32
    return %c0_i32, %arg0 : i32, i32
  }
  func.func @transform_4(%arg0: i32) -> (i32, i32) {
    %c0_i32 = arith.constant 0 : i32
    %c0_i32_0 = arith.constant 0 : i32
    return %c0_i32, %arg0 : i32, i32
  }
}

</mosaic_0001>

<llo_original>
// kernel: tpu_custom_call.1
$region0: #{tpu_custom_call.1}
  #allocation0 [shape = 'u32[]', space=smem, size = 0x4, offset = 0x4, fixed_abs, tag = 'smem constant byte address 0x4 - core index']
  #allocation1 [shape = 'u32[144,128]{1,0:T(1,128)}', space=vmem, size = 0x12000, scoped, tag = 'internal scratch']
  %s0 = inlined_call_operand.vmem [shape: f32[8,1], index: 0, kind: input, shape index: {}]
  %s1 = inlined_call_operand.hbm [shape: f32[8,512], index: 1, kind: input, shape index: {}]
  %s2 = inlined_call_operand.hbm [shape: f32[8,512], index: 2, kind: input, shape index: {}]
  %s3 = inlined_call_operand.hbm [shape: f32[8,512], index: 3, kind: output, shape index: {0}]
  %s4 = inlined_call_operand.hbm [shape: f32[8,512], index: 4, kind: output, shape index: {1}]
  %5 = xla_tuple %s3, %s4
  %s6 = sld [smem:[#allocation0]]
  $region61: #{tpu_custom_call.1} parent=0
    _
  %s8 = ssub.s32 1, %s6
  %s9 = scalar_select 0, %s8, %s6
  $region1: #{tpu_custom_call.1} parent=0
    #allocation2 [shape = 'u8[16384]{0}', space=vmem, size = 0x4000, scoped, tag = 'input window, operand 1']
    #allocation3 [shape = 's32[2]{0}', space=sflag, size = 0x8, scoped, tag = 'scoped memory for tpu_custom_call.1']
    #allocation4 [shape = 's32[2]{0}', space=sflag, size = 0x8, scoped, tag = 'scoped memory for tpu_custom_call.1']
    #allocation5 [shape = 'u8[16384]{0}', space=vmem, size = 0x4000, scoped, tag = 'input window, operand 2']
    #allocation6 [shape = 's32[2]{0}', space=sflag, size = 0x8, scoped, tag = 'scoped memory for tpu_custom_call.1']
    #allocation7 [shape = 'u8[16384]{0}', space=vmem, size = 0x4000, scoped, tag = 'output window, operand 0']
    #allocation8 [shape = 'u8[16384]{0}', space=vmem, size = 0x4000, scoped, tag = 'output window, operand 1']
    #allocation9 [shape = 's32[2]{0}', space=sflag, size = 0x8, scoped, tag = 'scoped memory for tpu_custom_call.1']
    %10 = vsyncpa [#allocation3], 0
    %s11 = scalar_lea.sflag [#allocation3], 1
    %12 = vsyncpa %s11, 0
    %13 = vsyncpa [#allocation6], 0
    %s14 = scalar_lea.sflag [#allocation6], 1
    %15 = vsyncpa %s14, 0
    %16 = vsyncpa [#allocation4], 0
    %s17 = scalar_lea.sflag [#allocation4], 1
    %18 = vsyncpa %s17, 0
    %19 = vsyncpa [#allocation9], 0
    %s20 = scalar_lea.sflag [#allocation9], 1
    %21 = vsyncpa %s20, 0
    loop: start=0, step=1, limit=4
    $region2: #{tpu_custom_call.1} parent=1 // loop_pre_header
      _
    $region3: #{tpu_custom_call.1} parent=1 // loop_header
      %s23 = sphi 0, %s27
      %p24 = scmp.ge.s32.totalorder %s23, 4
      %s31 = sphi 0, %s31
      %s33 = sphi 0, %s31
      %s34 = sphi 0, %s33
      %s48 = sphi 0, %s34
      %s54 = sphi 0, %s56
      %s57 = sphi 0, %s54
      %s58 = sphi 0, %s57
      %s74 = sphi 0, %s58
      %s80 = sphi 0, %s82
      %s83 = sphi 0, %s80
      %s84 = sphi 0, %s83
      %s100 = sphi 0, %s84
      %s106 = sphi 0, %s108
      %s109 = sphi 0, %s106
      %s110 = sphi 0, %s109
      %s126 = sphi 0, %s110
      %s132 = sphi 0, %s134
      %s135 = sphi 0, %s132
      %s136 = sphi 0, %s135
      %s152 = sphi 0, %s136
    $region4: #{tpu_custom_call.1} parent=1 // loop_header_branch
      %26 = sbr.rel (%p24) target = $region8
    $region5: #{tpu_custom_call.1} parent=1 // loop_body
      %s28 = ssub.s32 %s23, 1
      %s29 = ssub.s32 %s23, 2
      %s30 = sadd.s32 %s23, 1
      %s32 = sadd.s32 %s31, 1
      %p35 = scmp.eq.s32.totalorder %s23, 1
      %p36 = scmp.ne.s32.totalorder %s31, %s33
      %p37 = scmp.eq.s32.totalorder %s23, 0
      %p38 = por %p36, %p37
      %p39 = scmp.ne.s32.totalorder %s31, %s33
      %p40 = scmp.eq.s32.totalorder %s28, 1
      %p41 = por %p39, %p40
      %p42 = scmp.ne.s32.totalorder %s33, %s34
      %p43 = scmp.eq.s32.totalorder %s28, 0
      %p44 = por %p42, %p43
      %p45 = scmp.ne.s32.totalorder %s33, %s34
      %p46 = scmp.eq.s32.totalorder %s29, 1
      %p47 = por %p45, %p46
      %p49 = scmp.ne.s32.totalorder %s34, %s48
      %p50 = scmp.eq.s32.totalorder %s29, 0
      %p51 = por %p49, %p50
      %s52 = ssub.s32 %s23, %s30
      %p53 = scmp.eq.s32.totalorder %s52, 0
      %s55 = sadd.s32 %s54, 1
      %s56 = scalar_select %p53, %s54, %s55
      %p59 = pneg %p53
      %p60 = scmp.eq.s32.totalorder %s23, 1
      %p61 = por %p59, %p60
      %p62 = scmp.ne.s32.totalorder %s54, %s57
      %p63 = scmp.eq.s32.totalorder %s23, 0
      %p64 = por %p62, %p63
      %p65 = scmp.ne.s32.totalorder %s54, %s57
      %p66 = scmp.eq.s32.totalorder %s28, 1
      %p67 = por %p65, %p66
      %p68 = scmp.ne.s32.totalorder %s57, %s58
      %p69 = scmp.eq.s32.totalorder %s28, 0
      %p70 = por %p68, %p69
      %p71 = scmp.ne.s32.totalorder %s57, %s58
      %p72 = scmp.eq.s32.totalorder %s29, 1
      %p73 = por %p71, %p72
      %p75 = scmp.ne.s32.totalorder %s58, %s74
      %p76 = scmp.eq.s32.totalorder %s29, 0
      %p77 = por %p75, %p76
      %s78 = ssub.s32 %s23, %s30
      %p79 = scmp.eq.s32.totalorder %s78, 0
      %s81 = sadd.s32 %s80, 1
      %s82 = scalar_select %p79, %s80, %s81
      %p85 = pneg %p79
      %p86 = scmp.eq.s32.totalorder %s23, 1
      %p87 = por %p85, %p86
      %p88 = scmp.ne.s32.totalorder %s80, %s83
      %p89 = scmp.eq.s32.totalorder %s23, 0
      %p90 = por %p88, %p89
      %p91 = scmp.ne.s32.totalorder %s80, %s83
      %p92 = scmp.eq.s32.totalorder %s28, 1
      %p93 = por %p91, %p92
      %p94 = scmp.ne.s32.totalorder %s83, %s84
      %p95 = scmp.eq.s32.totalorder %s28, 0
      %p96 = por %p94, %p95
      %p97 = scmp.ne.s32.totalorder %s83, %s84
      %p98 = scmp.eq.s32.totalorder %s29, 1
      %p99 = por %p97, %p98
      %p101 = scmp.ne.s32.totalorder %s84, %s100
      %p102 = scmp.eq.s32.totalorder %s29, 0
      %p103 = por %p101, %p102
      %s104 = ssub.s32 %s23, %s30
      %p105 = scmp.eq.s32.totalorder %s104, 0
      %s107 = sadd.s32 %s106, 1
      %s108 = scalar_select %p105, %s106, %s107
      %p111 = pneg %p105
      %p112 = scmp.eq.s32.totalorder %s23, 1
      %p113 = por %p111, %p112
      %p114 = scmp.ne.s32.totalorder %s106, %s109
      %p115 = scmp.eq.s32.totalorder %s23, 0
      %p116 = por %p114, %p115
      %p117 = scmp.ne.s32.totalorder %s106, %s109
      %p118 = scmp.eq.s32.totalorder %s28, 1
      %p119 = por %p117, %p118
      %p120 = scmp.ne.s32.totalorder %s109, %s110
      %p121 = scmp.eq.s32.totalorder %s28, 0
      %p122 = por %p120, %p121
      %p123 = scmp.ne.s32.totalorder %s109, %s110
      %p124 = scmp.eq.s32.totalorder %s29, 1
      %p125 = por %p123, %p124
      %p127 = scmp.ne.s32.totalorder %s110, %s126
      %p128 = scmp.eq.s32.totalorder %s29, 0
      %p129 = por %p127, %p128
      %s130 = ssub.s32 %s23, %s30
      %p131 = scmp.eq.s32.totalorder %s130, 0
      %s133 = sadd.s32 %s132, 1
      %s134 = scalar_select %p131, %s132, %s133
      %p137 = pneg %p131
      %p138 = scmp.eq.s32.totalorder %s23, 1
      %p139 = por %p137, %p138
      %p140 = scmp.ne.s32.totalorder %s132, %s135
      %p141 = scmp.eq.s32.totalorder %s23, 0
      %p142 = por %p140, %p141
      %p143 = scmp.ne.s32.totalorder %s132, %s135
      %p144 = scmp.eq.s32.totalorder %s28, 1
      %p145 = por %p143, %p144
      %p146 = scmp.ne.s32.totalorder %s135, %s136
      %p147 = scmp.eq.s32.totalorder %s28, 0
      %p148 = por %p146, %p147
      %p149 = scmp.ne.s32.totalorder %s135, %s136
      %p150 = scmp.eq.s32.totalorder %s29, 1
      %p151 = por %p149, %p150
      %p153 = scmp.ne.s32.totalorder %s136, %s152
      %p154 = scmp.eq.s32.totalorder %s29, 0
      %p155 = por %p153, %p154
      %p156 = scmp.le.s32.totalorder 1, %s23
      %p157 = scmp.lt.s32.totalorder %s23, 3
      %p158 = pnand %p156, %p157
      %p159 = pneg %p158
      // Predicated region
      $region9: #{tpu_custom_call.1} parent=5 // pred_check
        _
      $region10: #{tpu_custom_call.1} parent=5 // pred_check_branch
        %161 = sbr.rel (%p158) target = $region12
      $region11: #{tpu_custom_call.1} parent=5 // pred_region
        %s162 = ssub.s32 %s23, 1
        // Predicated region
        $region13: #{tpu_custom_call.1} parent=11 // pred_check
          %p163 = pneg %p44
        $region14: #{tpu_custom_call.1} parent=11 // pred_check_branch
          %165 = sbr.rel (%p163) target = $region16
        $region15: #{tpu_custom_call.1} parent=11 // pred_region
          _
        $region16: #{tpu_custom_call.1} parent=11 // pred_fallthru
          _
      $region12: #{tpu_custom_call.1} parent=5 // pred_fallthru
        _
      %p166 = scmp.lt.s32.totalorder %s23, 2
      // Predicated region
      $region17: #{tpu_custom_call.1} parent=5 // pred_check
        %p167 = pneg %p166
      $region18: #{tpu_custom_call.1} parent=5 // pred_check_branch
        %169 = sbr.rel (%p167) target = $region20
      $region19: #{tpu_custom_call.1} parent=5 // pred_region
        // Predicated region
        $region21: #{tpu_custom_call.1} parent=19 // pred_check
          %p170 = pneg %p64
        $region22: #{tpu_custom_call.1} parent=19 // pred_check_branch
          %172 = sbr.rel (%p170) target = $region24
        $region23: #{tpu_custom_call.1} parent=19 // pred_region
          %s173 = sand.u32 %s54, 1
          %s174 = scalar_lea.sflag [#allocation3], %s173
          %s175 = sand.u32 %s54, 1
          %s176 = smul.addr %s175, 16
          %s177 = scalar_lea.vmem [#allocation2], %s176
          %s178 = smul.u32 2, %s23
          %s180 = ssub.s32 256, 256
          %181 = vsyncadd %s174, %s180
          %s182 = smul.addr %s178, 128
          %s183 = scalar_lea.hbm %s1, %s182
          %s185 = sshll.u32 %s177, 4
          %s186 = int_to_ptr.vmem [resolvable:$true] %s185
          %188 = dma.hbm_to_vmem [thread:$0]  %s183, 256, %s186, %s174
        $region24: #{tpu_custom_call.1} parent=19 // pred_fallthru
          _
        // Predicated region
        $region25: #{tpu_custom_call.1} parent=19 // pred_check
          %p189 = pneg %p90
        $region26: #{tpu_custom_call.1} parent=19 // pred_check_branch
          %191 = sbr.rel (%p189) target = $region28
        $region27: #{tpu_custom_call.1} parent=19 // pred_region
          %s192 = sand.u32 %s80, 1
          %s193 = scalar_lea.sflag [#allocation6], %s192
          %s194 = sand.u32 %s80, 1
          %s195 = smul.addr %s194, 16
          %s196 = scalar_lea.vmem [#allocation5], %s195
          %s197 = smul.u32 2, %s23
          %s199 = ssub.s32 256, 256
          %200 = vsyncadd %s193, %s199
          %s201 = smul.addr %s197, 128
          %s202 = scalar_lea.hbm %s2, %s201
          %s204 = sshll.u32 %s196, 4
          %s205 = int_to_ptr.vmem [resolvable:$true] %s204
          %207 = dma.hbm_to_vmem [thread:$0]  %s202, 256, %s205, %s193
        $region28: #{tpu_custom_call.1} parent=19 // pred_fallthru
          _
      $region20: #{tpu_custom_call.1} parent=5 // pred_fallthru
        _
      %p208 = scmp.le.s32.totalorder 1, %s23
      %p209 = scmp.lt.s32.totalorder %s23, 3
      %p210 = pnand %p208, %p209
      %p211 = pneg %p210
      // Predicated region
      $region29: #{tpu_custom_call.1} parent=5 // pred_check
        _
      $region30: #{tpu_custom_call.1} parent=5 // pred_check_branch
        %213 = sbr.rel (%p210) target = $region32
      $region31: #{tpu_custom_call.1} parent=5 // pred_region
        %s214 = ssub.s32 %s23, 1
        %s215 = sand.u32 %s57, 1
        %s216 = scalar_lea.sflag [#allocation3], %s215
        %s217 = sand.u32 %s57, 1
        %s218 = smul.addr %s217, 16
        %s219 = scalar_lea.vmem [#allocation2], %s218
        // Predicated region
        $region33: #{tpu_custom_call.1} parent=31 // pred_check
          %p220 = pneg %p70
        $region34: #{tpu_custom_call.1} parent=31 // pred_check_branch
          %222 = sbr.rel (%p220) target = $region36
        $region35: #{tpu_custom_call.1} parent=31 // pred_region
          %223 = dma.done %s216, 256
        $region36: #{tpu_custom_call.1} parent=31 // pred_fallthru
          _
        %s224 = sand.u32 %s83, 1
        %s225 = scalar_lea.sflag [#allocation6], %s224
        %s226 = sand.u32 %s83, 1
        %s227 = smul.addr %s226, 16
        %s228 = scalar_lea.vmem [#allocation5], %s227
        // Predicated region
        $region37: #{tpu_custom_call.1} parent=31 // pred_check
          %p229 = pneg %p96
        $region38: #{tpu_custom_call.1} parent=31 // pred_check_branch
          %231 = sbr.rel (%p229) target = $region40
        $region39: #{tpu_custom_call.1} parent=31 // pred_region
          %232 = dma.done %s225, 256
        $region40: #{tpu_custom_call.1} parent=31 // pred_fallthru
          _
        %p233 = pneg %p44
        %p234 = pneg %p41
        %s235 = sand.u32 %s57, 1
        %s236 = scalar_lea.sflag [#allocation3], %s235
        %s237 = sand.u32 %s57, 1
        %s238 = smul.addr %s237, 16
        %s239 = scalar_lea.vmem [#allocation2], %s238
        %p240 = pneg %p70
        %p241 = pneg %p67
        %s242 = sand.u32 %s83, 1
        %s243 = scalar_lea.sflag [#allocation6], %s242
        %s244 = sand.u32 %s83, 1
        %s245 = smul.addr %s244, 16
        %s246 = scalar_lea.vmem [#allocation5], %s245
        %p247 = pneg %p96
        %p248 = pneg %p93
        %p249 = pneg %p122
        %p250 = pneg %p119
        %s251 = sand.u32 %s109, 1
        %s252 = scalar_lea.sflag [#allocation4], %s251
        %s253 = sand.u32 %s109, 1
        %s254 = smul.addr %s253, 16
        %s255 = scalar_lea.vmem [#allocation7], %s254
        %p256 = pneg %p148
        %p257 = pneg %p145
        %s258 = sand.u32 %s135, 1
        %s259 = scalar_lea.sflag [#allocation9], %s258
        %s260 = sand.u32 %s135, 1
        %s261 = smul.addr %s260, 16
        %s262 = scalar_lea.vmem [#allocation8], %s261
        %s263 = smul.u32 2, %s28
        %s264 = smul.u32 2, %s28
        %s265 = smul.u32 2, %s28
        %s266 = smul.u32 2, %s28
        %v267 = vld [vmem:[%s0] sm:$0xff]
        %v268 = vld [vmem:[%s219] sm:$0xff]
        %v269 = vld [vmem:[%s219 + $0x8] sm:$0xff]
        %271 = vset.pattern.permute.xlu0 0
        %272 = vperm.xlu0 %271, %v267
        %v273 = vpop.permute.xlu0 %272
        %v275 = vmul.f32 %v273, %v268
        %v276 = vmul.f32 %v273, %v269
        %277 = vst [vmem:[%s255] sm:$0xff] %v275
        %278 = vst [vmem:[%s255 + $0x8] sm:$0xff] %v276
        %v279 = vld [vmem:[%s228] sm:$0xff]
        %v280 = vld [vmem:[%s228 + $0x8] sm:$0xff]
        %v281 = vmul.f32 %v273, %v279
        %v282 = vmul.f32 %v273, %v280
        %283 = vst [vmem:[%s262] sm:$0xff] %v281
        %284 = vst [vmem:[%s262 + $0x8] sm:$0xff] %v282
        %s285 = sand.u32 %s109, 1
        %s286 = scalar_lea.sflag [#allocation4], %s285
        %s287 = sand.u32 %s109, 1
        %s288 = smul.addr %s287, 16
        %s289 = scalar_lea.vmem [#allocation7], %s288
        %s290 = sand.u32 %s135, 1
        %s291 = scalar_lea.sflag [#allocation9], %s290
        %s292 = sand.u32 %s135, 1
        %s293 = smul.addr %s292, 16
        %s294 = scalar_lea.vmem [#allocation8], %s293
        // Predicated region
        $region41: #{tpu_custom_call.1} parent=31 // pred_check
          %p295 = pneg %p119
        $region42: #{tpu_custom_call.1} parent=31 // pred_check_branch
          %297 = sbr.rel (%p295) target = $region44
        $region43: #{tpu_custom_call.1} parent=31 // pred_region
          %s298 = smul.u32 2, %s28
          %s300 = ssub.s32 256, 256
          %301 = vsyncadd %s286, %s300
          %s302 = smul.addr %s298, 128
          %s303 = scalar_lea.hbm %s3, %s302
          %s305 = sshll.u32 %s289, 4
          %s306 = int_to_ptr.vmem [resolvable:$true] %s305
          %308 = dma.vmem_to_hbm [thread:$0]  %s306, 256, %s303, %s286
        $region44: #{tpu_custom_call.1} parent=31 // pred_fallthru
          _
        // Predicated region
        $region45: #{tpu_custom_call.1} parent=31 // pred_check
          %p309 = pneg %p145
        $region46: #{tpu_custom_call.1} parent=31 // pred_check_branch
          %311 = sbr.rel (%p309) target = $region48
        $region47: #{tpu_custom_call.1} parent=31 // pred_region
          %s312 = smul.u32 2, %s28
          %s314 = ssub.s32 256, 256
          %315 = vsyncadd %s291, %s314
          %s316 = smul.addr %s312, 128
          %s317 = scalar_lea.hbm %s4, %s316
          %s319 = sshll.u32 %s294, 4
          %s320 = int_to_ptr.vmem [resolvable:$true] %s319
          %322 = dma.vmem_to_hbm [thread:$0]  %s320, 256, %s317, %s291
        $region48: #{tpu_custom_call.1} parent=31 // pred_fallthru
          _
      $region32: #{tpu_custom_call.1} parent=5 // pred_fallthru
        _
      %p323 = scmp.le.s32.totalorder 2, %s23
      // Predicated region
      $region49: #{tpu_custom_call.1} parent=5 // pred_check
        %p324 = pneg %p323
      $region50: #{tpu_custom_call.1} parent=5 // pred_check_branch
        %326 = sbr.rel (%p324) target = $region52
      $region51: #{tpu_custom_call.1} parent=5 // pred_region
        %s327 = ssub.s32 %s23, 2
        // Predicated region
        $region53: #{tpu_custom_call.1} parent=51 // pred_check
          %p328 = pneg %p125
        $region54: #{tpu_custom_call.1} parent=51 // pred_check_branch
          %330 = sbr.rel (%p328) target = $region56
        $region55: #{tpu_custom_call.1} parent=51 // pred_region
          %s331 = sand.u32 %s110, 1
          %s332 = scalar_lea.sflag [#allocation4], %s331
          %s333 = sand.u32 %s110, 1
          %s334 = smul.addr %s333, 16
          %s335 = scalar_lea.vmem [#allocation7], %s334
          %336 = dma.done %s332, 256
        $region56: #{tpu_custom_call.1} parent=51 // pred_fallthru
          _
        // Predicated region
        $region57: #{tpu_custom_call.1} parent=51 // pred_check
          %p337 = pneg %p151
        $region58: #{tpu_custom_call.1} parent=51 // pred_check_branch
          %339 = sbr.rel (%p337) target = $region60
        $region59: #{tpu_custom_call.1} parent=51 // pred_region
          %s340 = sand.u32 %s136, 1
          %s341 = scalar_lea.sflag [#allocation9], %s340
          %s342 = sand.u32 %s136, 1
          %s343 = smul.addr %s342, 16
          %s344 = scalar_lea.vmem [#allocation8], %s343
          %345 = dma.done %s341, 256
        $region60: #{tpu_custom_call.1} parent=51 // pred_fallthru
          _
      $region52: #{tpu_custom_call.1} parent=5 // pred_fallthru
        _
    $region6: #{tpu_custom_call.1} parent=1 // loop_footer
      %s27 = sadd.s32 1, %s23
    $region7: #{tpu_custom_call.1} parent=1 // loop_footer_branch
      %22 = sbr.rel target = $region3
    $region8: #{tpu_custom_call.1} parent=1 // loop_exit
      _
    %346 = vsyncpa [#allocation3], 1
    %s347 = scalar_lea.sflag [#allocation3], 1
    %348 = vsyncpa %s347, 1
    %349 = vsyncpa [#allocation6], 1
    %s350 = scalar_lea.sflag [#allocation6], 1
    %351 = vsyncpa %s350, 1
    %352 = vsyncpa [#allocation4], 1
    %s353 = scalar_lea.sflag [#allocation4], 1
    %354 = vsyncpa %s353, 1
    %355 = vsyncpa [#allocation9], 1
    %s356 = scalar_lea.sflag [#allocation9], 1
    %357 = vsyncpa %s356, 1

</llo_original>
